<compile_context>
chip_gen: v6e
topology: v6e:2x2x1
jax: 0.10.0
libtpu: 0.0.40
codegen_flags: <defaults>
</compile_context>

<pallas_src>
import functools

import jax
import jax.numpy as jnp
from jax.experimental import pallas as pl
from jax.experimental.pallas import tpu as pltpu

# ---- model hyperparameters (small, consistent with the module) ----
VOCAB_SIZE = 50
EMBED_DIM = 32          # embedding_dim
N_FILTERS = 16          # n_filters
KERNEL_SIZES = (3, 4, 5)
N_CLASSES = 4
PAD_IDX = 0
BATCH = 2
SEQ_LEN = 16            # >= max(KERNEL_SIZES) (generate_min_pad guarantees this)

K_MAX = max(KERNEL_SIZES)
T_OUT = SEQ_LEN - min(KERNEL_SIZES) + 1          # widest valid time range (14)
T_PAD = ((T_OUT + 7) // 8) * 8                   # sublane-aligned time range (16)
C_PAD = 128                                      # lane-dense logits width


def textcnn_kernel(x_ref, w_ref, b_ref, mask_ref, wfc_ref, bfc_ref, out_ref,
                   *, batch, t_pad):
    """Fused conv -> bias/ReLU -> masked max-over-time -> FC, whole batch.

    x_ref    : (B*T_pad, K*E) f32  im2col'd embeddings (K = max kernel size)
    w_ref    : (K*E, 3F)      f32  packed conv weights (zero rows for taps >= fs)
    b_ref    : (1, 3F)        f32  packed conv biases
    mask_ref : (T_pad, 3F)    f32  1.0 where time step t is a valid window start
    wfc_ref  : (3F, 128)      f32  fc weight, zero-padded lane-dense
    bfc_ref  : (1, 128)       f32  fc bias, zero-padded lane-dense
    out_ref  : (B, 128)       f32  padded logits (cols >= n_classes are 0)
    """
    # All conv branches, all taps, all batch rows: ONE MXU matmul.
    act = jnp.dot(x_ref[...], w_ref[...], preferred_element_type=jnp.float32)
    act = jnp.maximum(act + b_ref[...], 0.0)               # bias + ReLU

    # Sublane-aligned masked max-over-time (invalid / padded windows -> 0;
    # safe because post-ReLU values are >= 0 and every branch has >= 1 valid
    # window).  T_pad is a multiple of 8, so the reshape is a layout no-op.
    nf3 = act.shape[-1]
    act = act.reshape(batch, t_pad, nf3) * mask_ref[...][None, :, :]
    pooled = jnp.max(act, axis=1)                           # (B, 3F)

    # TODO(synk): dropout omitted (inference/eval semantics -> identity)
    out_ref[...] = (jnp.dot(pooled, wfc_ref[...],
                            preferred_element_type=jnp.float32) + bfc_ref[...])


def pack_params(params):
    """One-time static packing (runs once, outside the per-call jitted path)."""
    E, F, S, K = EMBED_DIM, N_FILTERS, SEQ_LEN, K_MAX

    # Pack the three conv branches into one (K*E, 3F) weight matrix.
    w_blocks = []
    for i, fs in enumerate(KERNEL_SIZES):
        w = params["conv_w"][i]                                       # (fs, E, F)
        w_blocks.append(jnp.pad(w, ((0, K - fs), (0, 0), (0, 0))))    # (K, E, F)
    w_pack = jnp.concatenate(w_blocks, axis=-1).reshape(
        K * E, len(KERNEL_SIZES) * F)                                 # (K*E, 3F)
    b_pack = jnp.concatenate(params["conv_b"], axis=-1)               # (1, 3F)

    # Per-branch validity mask over time (1.0 where the window fits in S);
    # padded time rows t >= S - fs + 1 (including t >= T_OUT) are zeroed.
    t_idx = jnp.arange(T_PAD)[:, None]
    mask = jnp.concatenate(
        [jnp.broadcast_to((t_idx < (S - fs + 1)).astype(jnp.float32), (T_PAD, F))
         for fs in KERNEL_SIZES], axis=-1)                            # (T_PAD, 3F)

    # Lane-dense FC: zero-pad to 128 output lanes (unmasked vst in-kernel).
    fc_w = params["fc_w"]                                             # (3F, C)
    fc_b = params["fc_b"]                                             # (1, C)
    c = fc_w.shape[-1]
    fc_w_pad = jnp.pad(fc_w, ((0, 0), (0, C_PAD - c)))                # (3F, 128)
    fc_b_pad = jnp.pad(fc_b, ((0, 0), (0, C_PAD - c)))                # (1, 128)

    return {"w_pack": w_pack, "b_pack": b_pack, "mask": mask,
            "fc_w": fc_w_pad, "fc_b": fc_b_pad}


@jax.jit
def textcnn_forward(text, emb_table, packed):
    """text: (B, S) int32 token ids.  Returns logits (B, n_classes) f32."""
    embedded = emb_table[text]                         # (B, S, E) gather in JAX
    B, S, E = embedded.shape
    K = K_MAX

    # im2col: x[b*T_PAD + t, k*E + e] = emb[b, t+k, e]  (zero rows past S).
    emb_pad = jnp.pad(embedded, ((0, 0), (0, T_PAD + K - 1 - S), (0, 0)))
    x = jnp.concatenate([emb_pad[:, k:k + T_PAD, :] for k in range(K)], axis=-1)
    x = x.reshape(B * T_PAD, K * E)                    # (B*T_PAD, K*E)

    kernel = functools.partial(textcnn_kernel, batch=B, t_pad=T_PAD)
    vmem = pltpu.MemorySpace.VMEM
    out = pl.pallas_call(
        kernel,
        out_shape=jax.ShapeDtypeStruct((B, C_PAD), jnp.float32),
        in_specs=[pl.BlockSpec(memory_space=vmem)] * 6,   # whole-array VMEM blocks
        out_specs=pl.BlockSpec(memory_space=vmem),
    )(x, packed["w_pack"], packed["b_pack"], packed["mask"],
      packed["fc_w"], packed["fc_b"])
    return out[:, :N_CLASSES]


def init_params(key):
    """Deterministic parameter init matching the PyTorch module's shapes."""
    keys = jax.random.split(key, 3 + 2 * len(KERNEL_SIZES))
    ki = iter(keys)

    emb = jax.random.normal(next(ki), (VOCAB_SIZE, EMBED_DIM), jnp.float32) * 0.1
    emb = emb.at[PAD_IDX].set(0.0)   # padding_idx row is zero in nn.Embedding

    conv_w, conv_b = [], []
    for fs in KERNEL_SIZES:
        # PyTorch Conv2d weight: (F, 1, fs, E)  ->  tap layout (fs, E, F)
        w = jax.random.normal(next(ki), (N_FILTERS, 1, fs, EMBED_DIM),
                              jnp.float32) * 0.1
        conv_w.append(jnp.transpose(w[:, 0, :, :], (1, 2, 0)))
        conv_b.append(jax.random.normal(next(ki), (1, N_FILTERS), jnp.float32) * 0.1)

    # PyTorch Linear weight: (C, 3F); kernel uses its transpose (3F, C)
    fc_w = jax.random.normal(next(ki), (N_CLASSES, len(KERNEL_SIZES) * N_FILTERS),
                             jnp.float32) * 0.1
    fc_b = jax.random.normal(next(ki), (1, N_CLASSES), jnp.float32) * 0.1

    return {"embedding": emb, "conv_w": conv_w, "conv_b": conv_b,
            "fc_w": fc_w.T, "fc_b": fc_b}


def reference_forward(text, params):
    """Pure-JAX reference replicating the PyTorch forward (eval mode)."""
    emb = params["embedding"][text]  # (B, S, E)
    pooled = []
    for i, fs in enumerate(KERNEL_SIZES):
        w = params["conv_w"][i]      # (fs, E, F)
        b = params["conv_b"][i]      # (1, F)
        T = emb.shape[1] - fs + 1
        acc = jnp.zeros((emb.shape[0], T, N_FILTERS), jnp.float32)
        for k in range(fs):
            acc += jnp.einsum("bte,ef->btf", emb[:, k:k + T, :], w[k])
        acc = jnp.maximum(acc + b[None, :, :], 0.0)
        pooled.append(jnp.max(acc, axis=1))  # (B, F)
    cat = jnp.concatenate(pooled, axis=1)
    return cat @ params["fc_w"] + params["fc_b"]


if __name__ == "__main__":
    key = jax.random.PRNGKey(0)
    k_tok, k_params = jax.random.split(key)

    text = jax.random.randint(k_tok, (BATCH, SEQ_LEN), 0, VOCAB_SIZE, dtype=jnp.int32)
    params = init_params(k_params)

    # One-time static packing (outside the jitted per-call path).
    packed = jax.tree_util.tree_map(jax.block_until_ready, pack_params(params))

    logits = textcnn_forward(text, params["embedding"], packed)
    jax.block_until_ready(logits)

    ref = reference_forward(text, params)
    assert logits.shape == (BATCH, N_CLASSES)
    assert jnp.allclose(logits, ref, atol=1e-3, rtol=1e-3), (
        f"max abs err {jnp.max(jnp.abs(logits - ref))}")

    print("KERNEL_OK")
</pallas_src>

<mosaic_0001>
module attributes {stable_mosaic.version = 11 : i64} {
  func.func @textcnn_kernel(%arg0: memref<32x160xf32, #tpu.memory_space<vmem>>, %arg1: memref<160x48xf32, #tpu.memory_space<vmem>>, %arg2: memref<1x48xf32, #tpu.memory_space<vmem>>, %arg3: memref<16x48xf32, #tpu.memory_space<vmem>>, %arg4: memref<48x128xf32, #tpu.memory_space<vmem>>, %arg5: memref<1x128xf32, #tpu.memory_space<vmem>>, %arg6: memref<2x128xf32, #tpu.memory_space<vmem>>) attributes {dimension_semantics = [], scalar_prefetch = 0 : i64, scratch_operands = 0 : i64, tpu.core_type = #tpu.core_type<tc>} {
    %c0 = arith.constant 0 : index
    %c0_0 = arith.constant 0 : index
    %0 = vector.load %arg0[%c0, %c0_0] : memref<32x160xf32, #tpu.memory_space<vmem>>, vector<32x160xf32>
    %c0_1 = arith.constant 0 : index
    %c0_2 = arith.constant 0 : index
    %1 = vector.load %arg1[%c0_1, %c0_2] : memref<160x48xf32, #tpu.memory_space<vmem>>, vector<160x48xf32>
    %cst = arith.constant dense<0.000000e+00> : vector<32x48xf32>
    %2 = tpu.matmul %0, %1, %cst {dimension_numbers = #tpu.dot_dimension_numbers<[1], [0], [0], [1], [0, 0, 1, 1], [], []>} : vector<32x160xf32>, vector<160x48xf32>, vector<32x48xf32> -> vector<32x48xf32>
    %c0_3 = arith.constant 0 : index
    %c0_4 = arith.constant 0 : index
    %3 = vector.load %arg2[%c0_3, %c0_4] : memref<1x48xf32, #tpu.memory_space<vmem>>, vector<1x48xf32>
    %4 = vector.broadcast %3 : vector<1x48xf32> to vector<32x48xf32>
    %5 = arith.addf %2, %4 : vector<32x48xf32>
    %cst_5 = arith.constant 0.000000e+00 : f32
    %6 = vector.broadcast %cst_5 : f32 to vector<32x48xf32>
    %7 = arith.maximumf %5, %6 : vector<32x48xf32>
    %8 = vector.shape_cast %7 : vector<32x48xf32> to vector<2x16x48xf32>
    %c0_6 = arith.constant 0 : index
    %c0_7 = arith.constant 0 : index
    %9 = vector.load %arg3[%c0_6, %c0_7] : memref<16x48xf32, #tpu.memory_space<vmem>>, vector<16x48xf32>
    %10 = vector.shape_cast %9 : vector<16x48xf32> to vector<1x16x48xf32>
    %11 = vector.broadcast %10 : vector<1x16x48xf32> to vector<2x16x48xf32>
    %12 = arith.mulf %8, %11 : vector<2x16x48xf32>
    %cst_8 = arith.constant dense<0xFF800000> : vector<2x48xf32>
    %13 = vector.multi_reduction <maximumf>, %12, %cst_8 [1] : vector<2x16x48xf32> to vector<2x48xf32>
    %c0_9 = arith.constant 0 : index
    %c0_10 = arith.constant 0 : index
    %14 = vector.load %arg4[%c0_9, %c0_10] : memref<48x128xf32, #tpu.memory_space<vmem>>, vector<48x128xf32>
    %cst_11 = arith.constant dense<0.000000e+00> : vector<2x128xf32>
    %15 = tpu.matmul %13, %14, %cst_11 {dimension_numbers = #tpu.dot_dimension_numbers<[1], [0], [0], [1], [0, 0, 1, 1], [], []>} : vector<2x48xf32>, vector<48x128xf32>, vector<2x128xf32> -> vector<2x128xf32>
    %c0_12 = arith.constant 0 : index
    %c0_13 = arith.constant 0 : index
    %16 = vector.load %arg5[%c0_12, %c0_13] : memref<1x128xf32, #tpu.memory_space<vmem>>, vector<1x128xf32>
    %17 = vector.broadcast %16 : vector<1x128xf32> to vector<2x128xf32>
    %18 = arith.addf %15, %17 : vector<2x128xf32>
    %c0_14 = arith.constant 0 : index
    %c0_15 = arith.constant 0 : index
    %19 = vector.load %arg6[%c0_14, %c0_15] : memref<2x128xf32, #tpu.memory_space<vmem>>, vector<2x128xf32>
    tpu.vector_store %arg6[%c0_14, %c0_15], %18 {strides = array<i32>} : memref<2x128xf32, #tpu.memory_space<vmem>>, vector<2x128xf32>,
    return
  }
}

</mosaic_0001>

<llo_original>
// kernel: textcnn_forward.1
$region0: #{textcnn_forward.1}
  #allocation0 [shape = 'u32[]', space=smem, size = 0x4, offset = 0x4, fixed_abs, tag = 'smem constant byte address 0x4 - core index']
  #allocation1 [shape = 'u32[144,128]{1,0:T(1,128)}', space=vmem, size = 0x12000, scoped, tag = 'internal scratch']
  %s0 = inlined_call_operand.vmem [shape: f32[32,160], index: 0, kind: input, shape index: {}]
  %s1 = inlined_call_operand.vmem [shape: f32[160,48], index: 1, kind: input, shape index: {}]
  %s2 = inlined_call_operand.vmem [shape: f32[1,48], index: 2, kind: input, shape index: {}]
  %s3 = inlined_call_operand.vmem [shape: f32[16,48], index: 3, kind: input, shape index: {}]
  %s4 = inlined_call_operand.vmem [shape: f32[48,128], index: 4, kind: input, shape index: {}]
  %s5 = inlined_call_operand.vmem [shape: f32[1,128], index: 5, kind: input, shape index: {}]
  %s6 = inlined_call_operand.hbm [shape: f32[2,128], index: 6, kind: output, shape index: {}]
  %s7 = sld [smem:[#allocation0]]
  $region34: #{textcnn_forward.1} parent=0
    _
  %s9 = ssub.s32 1, %s7
  %s10 = scalar_select 0, %s9, %s7
  $region1: #{textcnn_forward.1} parent=0
    #allocation2 [shape = 'u8[1024]{0}', space=vmem, size = 0x400, scoped, tag = 'output window, operand 0, single buffered']
    #allocation3 [shape = 's32[1]{0}', space=sflag, size = 0x4, scoped, tag = 'scoped memory for textcnn_forward.1']
    %11 = vsyncpa [#allocation3], 0
    // Predicated region
    $region2: #{textcnn_forward.1} parent=1 // pred_check
      _
    $region3: #{textcnn_forward.1} parent=1 // pred_check_branch
      %13 = sbr.rel (0) target = $region5
    $region4: #{textcnn_forward.1} parent=1 // pred_region
      _
    $region5: #{textcnn_forward.1} parent=1 // pred_fallthru
      _
    // Predicated region
    $region6: #{textcnn_forward.1} parent=1 // pred_check
      _
    $region7: #{textcnn_forward.1} parent=1 // pred_check_branch
      %15 = sbr.rel (0) target = $region9
    $region8: #{textcnn_forward.1} parent=1 // pred_region
      _
    $region9: #{textcnn_forward.1} parent=1 // pred_fallthru
      _
    // Predicated region
    $region10: #{textcnn_forward.1} parent=1 // pred_check
      _
    $region11: #{textcnn_forward.1} parent=1 // pred_check_branch
      %17 = sbr.rel (0) target = $region13
    $region12: #{textcnn_forward.1} parent=1 // pred_region
      _
    $region13: #{textcnn_forward.1} parent=1 // pred_fallthru
      _
    // Predicated region
    $region14: #{textcnn_forward.1} parent=1 // pred_check
      _
    $region15: #{textcnn_forward.1} parent=1 // pred_check_branch
      %19 = sbr.rel (0) target = $region17
    $region16: #{textcnn_forward.1} parent=1 // pred_region
      _
    $region17: #{textcnn_forward.1} parent=1 // pred_fallthru
      _
    // Predicated region
    $region18: #{textcnn_forward.1} parent=1 // pred_check
      _
    $region19: #{textcnn_forward.1} parent=1 // pred_check_branch
      %21 = sbr.rel (0) target = $region21
    $region20: #{textcnn_forward.1} parent=1 // pred_region
      _
    $region21: #{textcnn_forward.1} parent=1 // pred_fallthru
      _
    // Predicated region
    $region22: #{textcnn_forward.1} parent=1 // pred_check
      _
    $region23: #{textcnn_forward.1} parent=1 // pred_check_branch
      %23 = sbr.rel (0) target = $region25
    $region24: #{textcnn_forward.1} parent=1 // pred_region
      _
    $region25: #{textcnn_forward.1} parent=1 // pred_fallthru
      _
    %v24 = vld [vmem:[%s0] sm:$0xff]
    %v25 = vld [vmem:[%s0 + $0x8] sm:$0xff]
    %v26 = vld [vmem:[%s0 + $0x10] sm:$0xff]
    %v27 = vld [vmem:[%s0 + $0x18] sm:$0xff]
    %v28 = vld [vmem:[%s0 + $0x20] sm:$0xff]
    %v29 = vld [vmem:[%s0 + $0x28] sm:$0xff]
    %v30 = vld [vmem:[%s0 + $0x30] sm:$0xff]
    %v31 = vld [vmem:[%s0 + $0x38] sm:$0xff]
    %v32 = vld [vmem:[%s1] sm:$0xff]
    %v33 = vld [vmem:[%s1 + $0x8] sm:$0xff]
    %v34 = vld [vmem:[%s1 + $0x10] sm:$0xff]
    %v35 = vld [vmem:[%s1 + $0x18] sm:$0xff]
    %v36 = vld [vmem:[%s1 + $0x20] sm:$0xff]
    %v37 = vld [vmem:[%s1 + $0x28] sm:$0xff]
    %v38 = vld [vmem:[%s1 + $0x30] sm:$0xff]
    %v39 = vld [vmem:[%s1 + $0x38] sm:$0xff]
    %v40 = vld [vmem:[%s1 + $0x40] sm:$0xff]
    %v41 = vld [vmem:[%s1 + $0x48] sm:$0xff]
    %v42 = vld [vmem:[%s1 + $0x50] sm:$0xff]
    %v43 = vld [vmem:[%s1 + $0x58] sm:$0xff]
    %v44 = vld [vmem:[%s1 + $0x60] sm:$0xff]
    %v45 = vld [vmem:[%s1 + $0x68] sm:$0xff]
    %v46 = vld [vmem:[%s1 + $0x70] sm:$0xff]
    %v47 = vld [vmem:[%s1 + $0x78] sm:$0xff]
    %v48 = vld [vmem:[%s1 + $0x80] sm:$0xff]
    %v49 = vld [vmem:[%s1 + $0x88] sm:$0xff]
    %v50 = vld [vmem:[%s1 + $0x90] sm:$0xff]
    %v51 = vld [vmem:[%s1 + $0x98] sm:$0xff]
    %v52 = vld [vmem:[%s2] sm:$0x1]
    %v54 = vlaneseq
    %v55 = vshrl.u32 %v54, 7
    %v56 = vsub.s32 0, %v55
    %v57 = vrot.slane %v52, %v56
    %vm59 = vcmask 261120
    %v61 = vsel %vm59, %v25, 0
    %v64 = vsel %vm59, %v27, 0
    %v67 = vsel %vm59, %v29, 0
    %v70 = vsel %vm59, %v31, 0
    %72 = vmatprep.subr.mxu0 0.0
    %73 = vmatpush1.msra.mxu0 %v47
    %74 = vmatprep.subr.mxu0 0.0
    %75 = vmatpush1.msra.mxu0 %v46
    %76 = vmatprep.subr.mxu0 0.0
    %77 = vmatpush1.msra.mxu0 %v45
    %78 = vmatprep.subr.mxu0 0.0
    %79 = vmatpush1.msra.mxu0 %v44
    %80 = vmatprep.subr.mxu0 0.0
    %81 = vmatpush1.msra.mxu0 %v43
    %82 = vmatprep.subr.mxu0 0.0
    %83 = vmatpush1.msra.mxu0 %v42
    %84 = vmatprep.subr.mxu0 0.0
    %85 = vmatpush1.msra.mxu0 %v41
    %86 = vmatprep.subr.mxu0 0.0
    %87 = vmatpush1.msra.mxu0 %v40
    %88 = vmatprep.subr.mxu0 0.0
    %89 = vmatpush1.msra.mxu0 %v39
    %90 = vmatprep.subr.mxu0 0.0
    %91 = vmatpush1.msra.mxu0 %v38
    %92 = vmatprep.subr.mxu0 0.0
    %93 = vmatpush1.msra.mxu0 %v37
    %94 = vmatprep.subr.mxu0 0.0
    %95 = vmatpush1.msra.mxu0 %v36
    %96 = vmatprep.subr.mxu0 0.0
    %97 = vmatpush1.msra.mxu0 %v35
    %98 = vmatprep.subr.mxu0 0.0
    %99 = vmatpush1.msra.mxu0 %v34
    %100 = vmatprep.subr.mxu0 0.0
    %101 = vmatpush1.msra.mxu0 %v33
    %102 = vmatprep.subr.mxu0 0.0
    %103 = vmatpush1.msra.mxu0 %v32
    %104 = vmatprep.subr.mxu0 0.0
    %105 = vmatpush2.msra.mxu0 0.0
    %106 = vmatprep.subr.mxu0 0.0
    %107 = vmatpush2.msra.mxu0 0.0
    %108 = vmatprep.subr.mxu0 0.0
    %109 = vmatpush2.msra.mxu0 0.0
    %110 = vmatprep.subr.mxu0 0.0
    %111 = vmatpush2.msra.mxu0 0.0
    %112 = vmatprep.subr.mxu0 0.0
    %113 = vmatpush2.msra.mxu0 0.0
    %114 = vmatprep.subr.mxu0 0.0
    %115 = vmatpush2.msra.mxu0 0.0
    %116 = vmatprep.subr.mxu0 0.0
    %117 = vmatpush2.msra.mxu0 0.0
    %118 = vmatprep.subr.mxu0 0.0
    %119 = vmatpush2.msra.mxu0 0.0
    %120 = vmatprep.subr.mxu0 0.0
    %121 = vmatpush2.msra.mxu0 0.0
    %122 = vmatprep.subr.mxu0 0.0
    %123 = vmatpush2.msra.mxu0 0.0
    %124 = vmatprep.subr.mxu0 0.0
    %125 = vmatpush2.msra.mxu0 0.0
    %126 = vmatprep.subr.mxu0 0.0
    %127 = vmatpush2.msra.mxu0 0.0
    %128 = vmatprep.subr.mxu0 0.0
    %129 = vmatpush2.msra.mxu0 %v51
    %130 = vmatprep.subr.mxu0 0.0
    %131 = vmatpush2.msra.mxu0 %v50
    %132 = vmatprep.subr.mxu0 0.0
    %133 = vmatpush2.msra.mxu0 %v49
    %134 = vmatprep.subr.mxu0 0.0
    %135 = vmatpush2.msra.mxu0 %v48
    %136 = vmatprep.mubr.f32.mxu0 %v61
    %137 = vmatmul.mubr.f32.gmra.mxu0 %v24
    %v138 = vpop.f32.mrf.mxu0
    %v139 = vadd.f32 %v57, %v138
    %v140 = vpop.f32.mrf.mxu0
    %141 = vmatprep.mubr.f32.mxu0 %v64
    %142 = vmatmul.mubr.f32.gmra.mxu0 %v26
    %v143 = vpop.f32.mrf.mxu0
    %v144 = vadd.f32 %v57, %v143
    %v145 = vpop.f32.mrf.mxu0
    %146 = vmatprep.mubr.f32.mxu0 %v67
    %147 = vmatmul.mubr.f32.gmra.mxu0 %v28
    %v148 = vpop.f32.mrf.mxu0
    %v149 = vadd.f32 %v57, %v148
    %v150 = vpop.f32.mrf.mxu0
    %151 = vmatprep.mubr.f32.mxu0 %v70
    %152 = vmatmul.mubr.f32.gmra.mxu0 %v30
    %v153 = vpop.f32.mrf.mxu0
    %v154 = vadd.f32 %v57, %v153
    %v155 = vpop.f32.mrf.mxu0
    %156 = vdwg.mxu0
    %v157 = vmax.f32 %v139, 0.0
    %v158 = vmax.f32 %v144, 0.0
    %v159 = vmax.f32 %v149, 0.0
    %v160 = vmax.f32 %v154, 0.0
    %v161 = vld [vmem:[%s3] sm:$0xff]
    %v162 = vld [vmem:[%s3 + $0x8] sm:$0xff]
    %v163 = vmul.f32 %v157, %v161
    %v164 = vmul.f32 %v158, %v162
    %v165 = vmul.f32 %v159, %v161
    %v166 = vmul.f32 %v160, %v162
    %vm167 = vcmask 392192
    %v168 = vsel %vm167, %v163, -inf
    %v169 = vsel %vm167, %v164, -inf
    %v170 = vmax.f32 %v168, %v169
    %v171 = vrot.slane %v170, 4
    %v172 = vmax.f32 %v170, %v171
    %v173 = vrot.slane %v172, 2
    %v174 = vmax.f32 %v172, %v173
    %v175 = vrot.slane %v174, 1
    %v176 = vmax.f32 %v174, %v175
    %v177 = vsel %vm167, %v165, -inf
    %v178 = vsel %vm167, %v166, -inf
    %v179 = vmax.f32 %v177, %v178
    %v180 = vrot.slane %v179, 4
    %v181 = vmax.f32 %v179, %v180
    %v182 = vrot.slane %v181, 2
    %v183 = vmax.f32 %v181, %v182
    %v184 = vrot.slane %v183, 1
    %v185 = vmax.f32 %v183, %v184
    %v186 = vld [vmem:[%s4] sm:$0xff]
    %v187 = vld [vmem:[%s4 + $0x8] sm:$0xff]
    %v188 = vld [vmem:[%s4 + $0x10] sm:$0xff]
    %v189 = vld [vmem:[%s4 + $0x18] sm:$0xff]
    %v190 = vld [vmem:[%s4 + $0x20] sm:$0xff]
    %v191 = vld [vmem:[%s4 + $0x28] sm:$0xff]
    %v192 = vld [vmem:[%s5] sm:$0x1]
    %v194 = vlaneseq
    %v195 = vshrl.u32 %v194, 7
    %v196 = vsub.s32 0, %v195
    %v197 = vrot.slane %v192, %v196
    %vm201 = vcmask 1041409
    %v202 = vsel %vm201, %v185, %v176
    %v203 = vsel %vm167, %v202, 0
    %205 = vmatprep.subr.mxu0 0.0
    %206 = vmatpush1.msra.mxu0 0.0
    %207 = vmatprep.subr.mxu0 0.0
    %208 = vmatpush1.msra.mxu0 0.0
    %209 = vmatprep.subr.mxu0 0.0
    %210 = vmatpush1.msra.mxu0 0.0
    %211 = vmatprep.subr.mxu0 0.0
    %212 = vmatpush1.msra.mxu0 0.0
    %213 = vmatprep.subr.mxu0 0.0
    %214 = vmatpush1.msra.mxu0 0.0
    %215 = vmatprep.subr.mxu0 0.0
    %216 = vmatpush1.msra.mxu0 0.0
    %217 = vmatprep.subr.mxu0 0.0
    %218 = vmatpush1.msra.mxu0 0.0
    %219 = vmatprep.subr.mxu0 0.0
    %220 = vmatpush1.msra.mxu0 0.0
    %221 = vmatprep.subr.mxu0 0.0
    %222 = vmatpush1.msra.mxu0 0.0
    %223 = vmatprep.subr.mxu0 0.0
    %224 = vmatpush1.msra.mxu0 0.0
    %225 = vmatprep.subr.mxu0 0.0
    %226 = vmatpush1.msra.mxu0 %v191
    %227 = vmatprep.subr.mxu0 0.0
    %228 = vmatpush1.msra.mxu0 %v190
    %229 = vmatprep.subr.mxu0 0.0
    %230 = vmatpush1.msra.mxu0 %v189
    %231 = vmatprep.subr.mxu0 0.0
    %232 = vmatpush1.msra.mxu0 %v188
    %233 = vmatprep.subr.mxu0 0.0
    %234 = vmatpush1.msra.mxu0 %v187
    %235 = vmatprep.subr.mxu0 0.0
    %236 = vmatpush1.msra.mxu0 %v186
    %237 = vmatprep.subr.mxu0 0.0
    %238 = vmatpush2.msra.mxu0 0.0
    %239 = vmatprep.subr.mxu0 0.0
    %240 = vmatpush2.msra.mxu0 0.0
    %241 = vmatprep.subr.mxu0 0.0
    %242 = vmatpush2.msra.mxu0 0.0
    %243 = vmatprep.subr.mxu0 0.0
    %244 = vmatpush2.msra.mxu0 0.0
    %245 = vmatprep.subr.mxu0 0.0
    %246 = vmatpush2.msra.mxu0 0.0
    %247 = vmatprep.subr.mxu0 0.0
    %248 = vmatpush2.msra.mxu0 0.0
    %249 = vmatprep.subr.mxu0 0.0
    %250 = vmatpush2.msra.mxu0 0.0
    %251 = vmatprep.subr.mxu0 0.0
    %252 = vmatpush2.msra.mxu0 0.0
    %253 = vmatprep.subr.mxu0 0.0
    %254 = vmatpush2.msra.mxu0 0.0
    %255 = vmatprep.subr.mxu0 0.0
    %256 = vmatpush2.msra.mxu0 0.0
    %257 = vmatprep.subr.mxu0 0.0
    %258 = vmatpush2.msra.mxu0 0.0
    %259 = vmatprep.subr.mxu0 0.0
    %260 = vmatpush2.msra.mxu0 0.0
    %261 = vmatprep.subr.mxu0 0.0
    %262 = vmatpush2.msra.mxu0 0.0
    %263 = vmatprep.subr.mxu0 0.0
    %264 = vmatpush2.msra.mxu0 0.0
    %265 = vmatprep.subr.mxu0 0.0
    %266 = vmatpush2.msra.mxu0 0.0
    %267 = vmatprep.subr.mxu0 0.0
    %268 = vmatpush2.msra.mxu0 0.0
    %269 = vmatprep.mubr.f32.mxu0 0.0
    %270 = vmatmul.mubr.f32.gmra.mxu0 %v203
    %v271 = vpop.f32.mrf.mxu0
    %v272 = vadd.f32 %v197, %v271
    %v273 = vpop.f32.mrf.mxu0
    %274 = vdwg.mxu0
    %275 = vst [vmem:[#allocation2] sm:$0x3] %v272
    // Predicated region
    $region26: #{textcnn_forward.1} parent=1 // pred_check
      _
    $region27: #{textcnn_forward.1} parent=1 // pred_check_branch
      %277 = sbr.rel (0) target = $region29
    $region28: #{textcnn_forward.1} parent=1 // pred_region
      %s279 = ssub.s32 32, 32
      %280 = vsyncadd [#allocation3], %s279
      %s282 = sshll.u32 [#allocation2], 4
      %s283 = int_to_ptr.vmem [resolvable:$true] %s282
      %285 = dma.vmem_to_hbm [thread:$0]  %s283, 32, %s6, [#allocation3]
    $region29: #{textcnn_forward.1} parent=1 // pred_fallthru
      _
    // Predicated region
    $region30: #{textcnn_forward.1} parent=1 // pred_check
      _
    $region31: #{textcnn_forward.1} parent=1 // pred_check_branch
      %287 = sbr.rel (0) target = $region33
    $region32: #{textcnn_forward.1} parent=1 // pred_region
      %288 = dma.done [#allocation3], 32
    $region33: #{textcnn_forward.1} parent=1 // pred_fallthru
      _
    %289 = vsyncpa [#allocation3], 1

</llo_original>
